<compile_context>
chip_gen: v5e
topology: v5e:2x2
jax: 0.10.0
libtpu: 0.0.40
codegen_flags: <defaults>
</compile_context>

<pallas_src>
import functools

import jax
import jax.numpy as jnp
from jax.experimental import pallas as pl
from jax.experimental.pallas import tpu as pltpu

_MIB = 1024 * 1024


# ----------------------------------------------------------------------------
# Single-buffered weight specs (feature-probed, no broad except around the
# real kernels).
# ----------------------------------------------------------------------------
def _probe_kernel(x_ref, o_ref):
    o_ref[...] = x_ref[...]


@functools.lru_cache(maxsize=None)
def _single_buffer_supported():
    """Probe pipeline_mode=pl.Buffered(1) on a throwaway kernel."""
    try:
        spec = pl.BlockSpec((8, 128), lambda i: (0, 0),
                            pipeline_mode=pl.Buffered(1))
    except (TypeError, AttributeError):
        return False
    try:
        x = jnp.zeros((8, 128), jnp.float32)
        y = pl.pallas_call(
            _probe_kernel,
            out_shape=jax.ShapeDtypeStruct((8, 128), jnp.float32),
            grid=(1,),
            in_specs=[spec],
            out_specs=pl.BlockSpec((8, 128), lambda i: (0, 0)),
        )(x)
        jax.block_until_ready(y)
        return True
    except Exception:
        # Broad except is confined to this tiny probe; the real kernels below
        # are built unguarded so genuine compile errors surface.
        return False


def _weight_spec(shape, single_buffer):
    """Grid-invariant weight/bias block; single-buffered when supported."""
    index_map = lambda *_: (0,) * len(shape)
    if single_buffer:
        return pl.BlockSpec(shape, index_map, pipeline_mode=pl.Buffered(1))
    return pl.BlockSpec(shape, index_map)


# ----------------------------------------------------------------------------
# Kernel 1: Q/K/V projection (Q pre-scaled by 1/sqrt(head_dim) via weights).
# ----------------------------------------------------------------------------
def _qkv_proj_kernel(x_ref, wq_ref, wk_ref, wv_ref, bq_ref, bk_ref, bv_ref,
                     q_ref, k_ref, v_ref, *, compute_dtype):
    x = x_ref[...].astype(compute_dtype)

    def proj(w_ref, b_ref, o_ref):
        y = jnp.dot(x, w_ref[...].astype(compute_dtype),
                    preferred_element_type=jnp.float32)
        o_ref[...] = (y + b_ref[...].astype(jnp.float32)).astype(o_ref.dtype)

    proj(wq_ref, bq_ref, q_ref)   # W_q/b_q already carry 1/sqrt(head_dim)
    proj(wk_ref, bk_ref, k_ref)
    proj(wv_ref, bv_ref, v_ref)


# ----------------------------------------------------------------------------
# Kernel 2: flash attention (online softmax over key tiles) + out-projection.
# ----------------------------------------------------------------------------
def _flash_attn_kernel(q_ref, k_ref, v_ref, wout_ref, bout_ref, *rest,
                       num_heads, head_dim, epsilon, use_multipliers,
                       compute_dtype):
    if use_multipliers:
        mult_ref, o_ref, m_sc, se_sc, sem_sc, acc_sc = rest
    else:
        o_ref, m_sc, se_sc, acc_sc = rest
        mult_ref = sem_sc = None

    H, hd = num_heads, head_dim
    TQ, D = q_ref.shape
    TK = k_ref.shape[0]
    cdt = compute_dtype
    ki = pl.program_id(2)

    @pl.when(ki == 0)
    def _():
        m_sc[...] = jnp.full_like(m_sc, -jnp.inf)
        se_sc[...] = jnp.zeros_like(se_sc)
        if use_multipliers:
            sem_sc[...] = jnp.zeros_like(sem_sc)
        acc_sc[...] = jnp.zeros_like(acc_sc)

    qh = q_ref[...].reshape(TQ, H, hd).astype(cdt)
    kh = k_ref[...].reshape(TK, H, hd).astype(cdt)
    vh = v_ref[...].reshape(TK, H, hd).astype(cdt)

    # (H, TQ, TK) f32 scores; the 1/sqrt(hd) scale is folded into W_q.
    s = jnp.einsum('qhd,khd->hqk', qh, kh, preferred_element_type=jnp.float32)

    m_prev = m_sc[...]
    m_new = jnp.maximum(m_prev, jnp.max(s, axis=-1, keepdims=True))
    corr = jnp.exp(m_prev - m_new)            # first key tile: exp(-inf) = 0
    e = jnp.exp(s - m_new)

    se_sc[...] = corr * se_sc[...] + jnp.sum(e, axis=-1, keepdims=True)

    if use_multipliers:
        mult = mult_ref[...].astype(jnp.float32)        # (TQ, TK)
        p = e * mult[None, :, :]
        sem_sc[...] = corr * sem_sc[...] + jnp.sum(p, axis=-1, keepdims=True)
    else:
        p = e

    acc_sc[...] = corr * acc_sc[...] + jnp.einsum(
        'hqk,khd->hqd', p.astype(cdt), vh, preferred_element_type=jnp.float32)
    m_sc[...] = m_new

    @pl.when(ki == pl.num_programs(2) - 1)
    def _():
        if use_multipliers:
            # softmax(s)*mult / (sum(softmax(s)*mult) + eps)
            #   == acc / (sum(e*mult) + eps*sum(e)), all sums taken online.
            denom = sem_sc[...] + epsilon * se_sc[...]
        else:
            denom = se_sc[...]
        inv = pl.reciprocal(denom, approx=True)          # EUP, ~approx numerics
        ctx = acc_sc[...] * inv                          # (H, TQ, hd)
        attn = jnp.transpose(ctx, (1, 0, 2)).reshape(TQ, D)
        out = jnp.dot(attn.astype(cdt), wout_ref[...].astype(cdt),
                      preferred_element_type=jnp.float32)
        out = out + bout_ref[...].astype(jnp.float32)
        o_ref[...] = out.astype(o_ref.dtype)


# ----------------------------------------------------------------------------
# Wrapper
# ----------------------------------------------------------------------------
def _pick_tile(S, requested, max_tile, lane_constrained=False):
    min_tile = 128 if lane_constrained else 8
    if requested is not None:
        t = int(requested)
        if t != S:
            assert S % t == 0 and t % min_tile == 0, (
                f"tile {t} must equal S={S}, or divide it and be a multiple "
                f"of {min_tile}")
        return t
    if S % min_tile != 0:
        return S
    cand = max_tile
    while cand >= min_tile:
        if cand <= S and S % cand == 0:
            return cand
        cand //= 2
    return S


def _vmem_limit(estimate_bytes, override):
    if override is not None:
        return int(override)
    # Default scoped limits (16 MiB v5e, 32 MiB v6e/v7x) can silently shrink
    # pipelining for big tiles; request what the tiles need, with headroom.
    est = int(estimate_bytes * 1.5) + 4 * _MIB
    return max(32 * _MIB, min(est, 127 * _MIB))


def attention_block(x, wqkv, bqkv, wout, bout, multipliers=None, *,
                    num_heads, epsilon=1e-15, q_block=None, k_block=None,
                    s_block=None, compute_dtype=None, vmem_limit_bytes=None):
    """Pallas forward of AttentionBlock.

    wqkv: (D, 3D) (transposed torch weight), bqkv: (3D,),
    wout: (D, D)  (transposed torch weight), bout: (D,).
    multipliers: optional (B, S, S).
    """
    B, S, D = x.shape
    assert D % num_heads == 0, "total dimension not divisible by num_heads"
    hd = D // num_heads
    use_mult = multipliers is not None
    if use_mult:
        assert multipliers.shape == (B, S, S)

    cdt = jnp.dtype(compute_dtype) if compute_dtype is not None \
        else jnp.dtype(x.dtype)
    single_buffer = _single_buffer_supported()

    # Fold the softmax preconditioning into the Q projection (free) and split
    # the fused QKV parameters once at the wrapper.
    scale = 1.0 / float(hd) ** 0.5
    wq = wqkv[:, :D] * scale
    wk = wqkv[:, D:2 * D]
    wv = wqkv[:, 2 * D:]
    bq = (bqkv[:D] * scale).reshape(1, D)
    bk = bqkv[D:2 * D].reshape(1, D)
    bv = bqkv[2 * D:].reshape(1, D)
    bout2 = bout.reshape(1, D)

    # Conservative defaults fit v5e/v6e (128 MiB VMEM) and v7x (64 MiB).
    # When multipliers are present, the key tile is the minor dim of the
    # (TQ, TK) multiplier block, so it must be a multiple of 128 (or S).
    TS = _pick_tile(S, s_block, 256)
    TQ = _pick_tile(S, q_block, 128)
    TK = _pick_tile(S, k_block, 512, lane_constrained=use_mult)
    ns, nq, nk = S // TS, S // TQ, S // TK

    x_isz = jnp.dtype(x.dtype).itemsize
    w_isz = jnp.dtype(wqkv.dtype).itemsize
    qkv_dtype = cdt                      # bf16 compute => bf16 Q/K/V in HBM
    qkv_isz = qkv_dtype.itemsize
    mult_isz = jnp.dtype(multipliers.dtype).itemsize if use_mult else 0

    # ---------------- Kernel 1: Q/K/V projection ----------------
    proj_vmem = (2 * TS * D * x_isz                 # x tile (double-buffered)
                 + 3 * 2 * TS * D * qkv_isz         # q/k/v output tiles
                 + 3 * (D * D + D) * w_isz * 2      # weights (conservative)
                 + 4 * TS * D * 4)                  # f32 matmul intermediates
    proj_cost = pl.CostEstimate(
        flops=int(2 * B * S * D * 3 * D),
        transcendentals=0,
        bytes_accessed=int(B * S * D * x_isz + 3 * B * S * D * qkv_isz
                           + 3 * (D * D + D) * w_isz))

    q, k, v = pl.pallas_call(
        functools.partial(_qkv_proj_kernel, compute_dtype=cdt),
        out_shape=tuple(jax.ShapeDtypeStruct((B, S, D), qkv_dtype)
                        for _ in range(3)),
        grid_spec=pltpu.PrefetchScalarGridSpec(
            num_scalar_prefetch=0,
            grid=(B, ns),
            in_specs=[
                pl.BlockSpec((None, TS, D), lambda b, si: (b, si, 0)),
                _weight_spec((D, D), single_buffer),
                _weight_spec((D, D), single_buffer),
                _weight_spec((D, D), single_buffer),
                _weight_spec((1, D), single_buffer),
                _weight_spec((1, D), single_buffer),
                _weight_spec((1, D), single_buffer),
            ],
            out_specs=[pl.BlockSpec((None, TS, D), lambda b, si: (b, si, 0))] * 3,
        ),
        compiler_params=pltpu.CompilerParams(
            dimension_semantics=("parallel", "parallel"),
            vmem_limit_bytes=_vmem_limit(proj_vmem, vmem_limit_bytes)),
        cost_estimate=proj_cost,
    )(x, wq, wk, wv, bq, bk, bv)

    # ---------------- Kernel 2: flash attention + out-proj ----------------
    attn_vmem = (2 * TQ * D * qkv_isz               # q tile
                 + 2 * 2 * TK * D * qkv_isz         # k + v tiles
                 + (2 * TQ * TK * mult_isz if use_mult else 0)
                 + (D * D + D) * w_isz * 2          # out-proj weights
                 + 2 * TQ * D * x_isz               # output tile
                 + (3 * num_heads * TQ * 128 + TQ * D) * 4   # stats + acc
                 + 5 * num_heads * TQ * TK * 4)     # s/e/p/upd intermediates
    attn_cost = pl.CostEstimate(
        flops=int(B * (4 * S * S * D + 2 * S * D * D)),
        transcendentals=int(B * num_heads * S * (S + 2 * nk)),
        bytes_accessed=int(3 * B * S * D * qkv_isz + B * S * D * x_isz
                           + (D * D + D) * w_isz
                           + (B * S * S * mult_isz if use_mult else 0)))

    kernel = functools.partial(
        _flash_attn_kernel, num_heads=num_heads, head_dim=hd, epsilon=epsilon,
        use_multipliers=use_mult, compute_dtype=cdt)

    in_specs = [
        pl.BlockSpec((None, TQ, D), lambda b, qi, ki: (b, qi, 0)),
        pl.BlockSpec((None, TK, D), lambda b, qi, ki: (b, ki, 0)),
        pl.BlockSpec((None, TK, D), lambda b, qi, ki: (b, ki, 0)),
        _weight_spec((D, D), single_buffer),
        _weight_spec((1, D), single_buffer),
    ]
    args = [q, k, v, wout, bout2]
    if use_mult:
        in_specs.append(
            pl.BlockSpec((None, TQ, TK), lambda b, qi, ki: (b, qi, ki)))
        args.append(multipliers)

    scratch = [pltpu.VMEM((num_heads, TQ, 1), jnp.float32),    # running max
               pltpu.VMEM((num_heads, TQ, 1), jnp.float32)]    # sum(e)
    if use_mult:
        scratch.append(pltpu.VMEM((num_heads, TQ, 1), jnp.float32))  # sum(e*m)
    scratch.append(pltpu.VMEM((num_heads, TQ, hd), jnp.float32))     # acc

    return pl.pallas_call(
        kernel,
        out_shape=jax.ShapeDtypeStruct((B, S, D), x.dtype),
        grid_spec=pltpu.PrefetchScalarGridSpec(
            num_scalar_prefetch=0,
            grid=(B, nq, nk),
            in_specs=in_specs,
            out_specs=pl.BlockSpec((None, TQ, D), lambda b, qi, ki: (b, qi, 0)),
            scratch_shapes=scratch),
        compiler_params=pltpu.CompilerParams(
            dimension_semantics=("parallel", "parallel", "arbitrary"),
            vmem_limit_bytes=_vmem_limit(attn_vmem, vmem_limit_bytes)),
        cost_estimate=attn_cost,
    )(*args)


# ----------------------------------------------------------------------------
# Pure-JAX reference mirroring the PyTorch forward.
# ----------------------------------------------------------------------------
def attention_block_ref(x, wqkv, bqkv, wout, bout, multipliers=None,
                        *, num_heads, epsilon=1e-15):
    B, S, D = x.shape
    hd = D // num_heads
    qkv = x @ wqkv + bqkv                                   # (B, S, 3D)
    qkv = qkv.reshape(B, S, 3, num_heads, hd).transpose(2, 0, 3, 1, 4)
    q, k, v = qkv[0], qkv[1], qkv[2]                        # (B, H, S, hd)
    alpha = jnp.einsum('bhqd,bhkd->bhqk', q, k) * (1.0 / jnp.sqrt(hd))
    alpha = jax.nn.softmax(alpha, axis=-1)
    if multipliers is not None:
        alpha = alpha * multipliers[:, None, :, :]
        alpha = alpha / (alpha.sum(-1, keepdims=True) + epsilon)
    out = jnp.einsum('bhqk,bhkd->bhqd', alpha, v)           # (B, H, S, hd)
    out = out.transpose(0, 2, 1, 3).reshape(B, S, D)
    return out @ wout + bout


if __name__ == "__main__":
    B, S, D, H = 2, 8, 32, 4

    key = jax.random.PRNGKey(0)
    kx, kw1, kw2, km, kx2, kx3, km3 = jax.random.split(key, 7)

    # input_linear: xavier_uniform_ weight (fan_in=D, fan_out=3D), zero bias.
    xav_bound = (6.0 / (D + 3 * D)) ** 0.5
    wqkv = jax.random.uniform(kw1, (D, 3 * D), jnp.float32,
                              minval=-xav_bound, maxval=xav_bound)
    bqkv = jnp.zeros((3 * D,), jnp.float32)

    # output_linear: default kaiming-uniform-ish weight, zero bias.
    out_bound = 1.0 / (D ** 0.5)
    wout = jax.random.uniform(kw2, (D, D), jnp.float32,
                              minval=-out_bound, maxval=out_bound)
    bout = jnp.zeros((D,), jnp.float32)

    x = jax.random.normal(kx, (B, S, D), jnp.float32)
    mult = jax.random.uniform(km, (B, S, S), jnp.float32,
                              minval=0.1, maxval=1.0)

    # Tolerance covers the EUP approximate reciprocal in the normalization.
    TOL = dict(atol=1e-2, rtol=1e-2)

    # 1) no multipliers
    y = jax.block_until_ready(
        attention_block(x, wqkv, bqkv, wout, bout, None, num_heads=H))
    y_ref = attention_block_ref(x, wqkv, bqkv, wout, bout, None, num_heads=H)
    assert jnp.allclose(y, y_ref, **TOL), "mismatch (no multipliers)"

    # 2) with multipliers (fused renormalization path)
    y2 = jax.block_until_ready(
        attention_block(x, wqkv, bqkv, wout, bout, mult, num_heads=H))
    y2_ref = attention_block_ref(x, wqkv, bqkv, wout, bout, mult, num_heads=H)
    assert jnp.allclose(y2, y2_ref, **TOL), "mismatch (multipliers)"

    # 3) multi query-tile AND multi key-tile (online softmax across key
    #    tiles), without multipliers so the key tile is not lane-constrained.
    S2 = 16
    x2 = jax.random.normal(kx2, (B, S2, D), jnp.float32)
    y3 = jax.block_until_ready(
        attention_block(x2, wqkv, bqkv, wout, bout, None, num_heads=H,
                        q_block=8, k_block=8, s_block=8))
    y3_ref = attention_block_ref(x2, wqkv, bqkv, wout, bout, None, num_heads=H)
    assert jnp.allclose(y3, y3_ref, **TOL), "mismatch (tiled, no multipliers)"

    # 4) multi key-tile WITH multipliers (online multiplier renormalization;
    #    TK must be a multiple of 128 when it does not span the sequence).
    S3 = 256
    x3 = jax.random.normal(kx3, (B, S3, D), jnp.float32)
    mult3 = jax.random.uniform(km3, (B, S3, S3), jnp.float32,
                               minval=0.1, maxval=1.0)
    y4 = jax.block_until_ready(
        attention_block(x3, wqkv, bqkv, wout, bout, mult3, num_heads=H,
                        q_block=128, k_block=128))
    y4_ref = attention_block_ref(x3, wqkv, bqkv, wout, bout, mult3,
                                 num_heads=H)
    assert jnp.allclose(y4, y4_ref, **TOL), "mismatch (tiled multipliers)"

    # 5) bf16 MXU-operand path for f32 inputs (looser tolerance).
    y5 = jax.block_until_ready(
        attention_block(x, wqkv, bqkv, wout, bout, mult, num_heads=H,
                        compute_dtype=jnp.bfloat16))
    assert jnp.allclose(y5, y2_ref, atol=0.1, rtol=0.1), \
        "mismatch (bf16 compute)"

    print("KERNEL_OK")
</pallas_src>

<mosaic_0001>
module attributes {stable_mosaic.version = 11 : i64} {
  func.func @_probe_kernel(%arg0: i32, %arg1: memref<8x128xf32, #tpu.memory_space<vmem>>, %arg2: memref<8x128xf32, #tpu.memory_space<vmem>>) attributes {dimension_semantics = [#tpu.dimension_semantics<arbitrary>], iteration_bounds = array<i64: 1>, scalar_prefetch = 0 : i64, scratch_operands = 0 : i64, tpu.core_type = #tpu.core_type<tc>, window_params = [{pipeline_mode = #tpu.pipeline_mode<synchronous>, transform_indices = @transform_0, window_bounds = array<i64: 8, 128>}, {pipeline_mode = #tpu.pipeline_mode<synchronous>, transform_indices = @transform_1, window_bounds = array<i64: 8, 128>}]} {
    %c0 = arith.constant 0 : index
    %c0_0 = arith.constant 0 : index
    %0 = vector.load %arg1[%c0, %c0_0] : memref<8x128xf32, #tpu.memory_space<vmem>>, vector<8x128xf32>
    %c0_1 = arith.constant 0 : index
    %c0_2 = arith.constant 0 : index
    %1 = vector.load %arg2[%c0_1, %c0_2] : memref<8x128xf32, #tpu.memory_space<vmem>>, vector<8x128xf32>
    tpu.vector_store %arg2[%c0_1, %c0_2], %0 {strides = array<i32>} : memref<8x128xf32, #tpu.memory_space<vmem>>, vector<8x128xf32>,
    return
  }
  func.func @transform_0(%arg0: i32) -> (i32, i32) {
    %c0_i32 = arith.constant 0 : i32
    %c0_i32_0 = arith.constant 0 : i32
    %c0_i32_1 = arith.constant 0 : i32
    return %c0_i32, %c0_i32_0 : i32, i32
  }
  func.func @transform_1(%arg0: i32) -> (i32, i32) {
    %c0_i32 = arith.constant 0 : i32
    %c0_i32_0 = arith.constant 0 : i32
    %c0_i32_1 = arith.constant 0 : i32
    return %c0_i32, %c0_i32_0 : i32, i32
  }
}

module attributes {stable_mosaic.version = 11 : i64} {
  func.func @_qkv_proj_kernel(%arg0: i32, %arg1: i32, %arg2: memref<1x8x32xf32, #tpu.memory_space<vmem>>, %arg3: memref<32x32xf32, #tpu.memory_space<vmem>>, %arg4: memref<32x32xf32, #tpu.memory_space<vmem>>, %arg5: memref<32x32xf32, #tpu.memory_space<vmem>>, %arg6: memref<1x32xf32, #tpu.memory_space<vmem>>, %arg7: memref<1x32xf32, #tpu.memory_space<vmem>>, %arg8: memref<1x32xf32, #tpu.memory_space<vmem>>, %arg9: memref<1x8x32xf32, #tpu.memory_space<vmem>>, %arg10: memref<1x8x32xf32, #tpu.memory_space<vmem>>, %arg11: memref<1x8x32xf32, #tpu.memory_space<vmem>>) attributes {dimension_semantics = [#tpu.dimension_semantics<parallel>, #tpu.dimension_semantics<parallel>], iteration_bounds = array<i64: 2, 1>, scalar_prefetch = 0 : i64, scratch_operands = 0 : i64, tpu.core_type = #tpu.core_type<tc>, window_params = [{transform_indices = @transform_0, window_bounds = array<i64: 1, 8, 32>}, {pipeline_mode = #tpu.pipeline_mode<synchronous>, transform_indices = @transform_1, window_bounds = array<i64: 32, 32>}, {pipeline_mode = #tpu.pipeline_mode<synchronous>, transform_indices = @transform_2, window_bounds = array<i64: 32, 32>}, {pipeline_mode = #tpu.pipeline_mode<synchronous>, transform_indices = @transform_3, window_bounds = array<i64: 32, 32>}, {pipeline_mode = #tpu.pipeline_mode<synchronous>, transform_indices = @transform_4, window_bounds = array<i64: 1, 32>}, {pipeline_mode = #tpu.pipeline_mode<synchronous>, transform_indices = @transform_5, window_bounds = array<i64: 1, 32>}, {pipeline_mode = #tpu.pipeline_mode<synchronous>, transform_indices = @transform_6, window_bounds = array<i64: 1, 32>}, {transform_indices = @transform_7, window_bounds = array<i64: 1, 8, 32>}, {transform_indices = @transform_8, window_bounds = array<i64: 1, 8, 32>}, {transform_indices = @transform_9, window_bounds = array<i64: 1, 8, 32>}]} {
    %c0 = arith.constant 0 : index
    %c0_0 = arith.constant 0 : index
    %c0_1 = arith.constant 0 : index
    %0 = vector.load %arg2[%c0, %c0_0, %c0_1] : memref<1x8x32xf32, #tpu.memory_space<vmem>>, vector<1x8x32xf32>
    %1 = vector.shape_cast %0 : vector<1x8x32xf32> to vector<8x32xf32>
    %c0_2 = arith.constant 0 : index
    %c0_3 = arith.constant 0 : index
    %2 = vector.load %arg3[%c0_2, %c0_3] : memref<32x32xf32, #tpu.memory_space<vmem>>, vector<32x32xf32>
    %cst = arith.constant dense<0.000000e+00> : vector<8x32xf32>
    %3 = tpu.matmul %1, %2, %cst {dimension_numbers = #tpu.dot_dimension_numbers<[1], [0], [0], [1], [0, 0, 1, 1], [], []>} : vector<8x32xf32>, vector<32x32xf32>, vector<8x32xf32> -> vector<8x32xf32>
    %c0_4 = arith.constant 0 : index
    %c0_5 = arith.constant 0 : index
    %4 = vector.load %arg6[%c0_4, %c0_5] : memref<1x32xf32, #tpu.memory_space<vmem>>, vector<1x32xf32>
    %5 = vector.broadcast %4 : vector<1x32xf32> to vector<8x32xf32>
    %6 = arith.addf %3, %5 : vector<8x32xf32>
    %c0_6 = arith.constant 0 : index
    %c0_7 = arith.constant 0 : index
    %c0_8 = arith.constant 0 : index
    %7 = vector.load %arg9[%c0_6, %c0_7, %c0_8] : memref<1x8x32xf32, #tpu.memory_space<vmem>>, vector<1x8x32xf32>
    %8 = vector.shape_cast %7 : vector<1x8x32xf32> to vector<8x32xf32>
    %9 = vector.shape_cast %6 : vector<8x32xf32> to vector<1x8x32xf32>
    tpu.vector_store %arg9[%c0_6, %c0_7, %c0_8], %9 {strides = array<i32>} : memref<1x8x32xf32, #tpu.memory_space<vmem>>, vector<1x8x32xf32>,
    %c0_9 = arith.constant 0 : index
    %c0_10 = arith.constant 0 : index
    %10 = vector.load %arg4[%c0_9, %c0_10] : memref<32x32xf32, #tpu.memory_space<vmem>>, vector<32x32xf32>
    %cst_11 = arith.constant dense<0.000000e+00> : vector<8x32xf32>
    %11 = tpu.matmul %1, %10, %cst_11 {dimension_numbers = #tpu.dot_dimension_numbers<[1], [0], [0], [1], [0, 0, 1, 1], [], []>} : vector<8x32xf32>, vector<32x32xf32>, vector<8x32xf32> -> vector<8x32xf32>
    %c0_12 = arith.constant 0 : index
    %c0_13 = arith.constant 0 : index
    %12 = vector.load %arg7[%c0_12, %c0_13] : memref<1x32xf32, #tpu.memory_space<vmem>>, vector<1x32xf32>
    %13 = vector.broadcast %12 : vector<1x32xf32> to vector<8x32xf32>
    %14 = arith.addf %11, %13 : vector<8x32xf32>
    %c0_14 = arith.constant 0 : index
    %c0_15 = arith.constant 0 : index
    %c0_16 = arith.constant 0 : index
    %15 = vector.load %arg10[%c0_14, %c0_15, %c0_16] : memref<1x8x32xf32, #tpu.memory_space<vmem>>, vector<1x8x32xf32>
    %16 = vector.shape_cast %15 : vector<1x8x32xf32> to vector<8x32xf32>
    %17 = vector.shape_cast %14 : vector<8x32xf32> to vector<1x8x32xf32>
    tpu.vector_store %arg10[%c0_14, %c0_15, %c0_16], %17 {strides = array<i32>} : memref<1x8x32xf32, #tpu.memory_space<vmem>>, vector<1x8x32xf32>,
    %c0_17 = arith.constant 0 : index
    %c0_18 = arith.constant 0 : index
    %18 = vector.load %arg5[%c0_17, %c0_18] : memref<32x32xf32, #tpu.memory_space<vmem>>, vector<32x32xf32>
    %cst_19 = arith.constant dense<0.000000e+00> : vector<8x32xf32>
    %19 = tpu.matmul %1, %18, %cst_19 {dimension_numbers = #tpu.dot_dimension_numbers<[1], [0], [0], [1], [0, 0, 1, 1], [], []>} : vector<8x32xf32>, vector<32x32xf32>, vector<8x32xf32> -> vector<8x32xf32>
    %c0_20 = arith.constant 0 : index
    %c0_21 = arith.constant 0 : index
    %20 = vector.load %arg8[%c0_20, %c0_21] : memref<1x32xf32, #tpu.memory_space<vmem>>, vector<1x32xf32>
    %21 = vector.broadcast %20 : vector<1x32xf32> to vector<8x32xf32>
    %22 = arith.addf %19, %21 : vector<8x32xf32>
    %c0_22 = arith.constant 0 : index
    %c0_23 = arith.constant 0 : index
    %c0_24 = arith.constant 0 : index
    %23 = vector.load %arg11[%c0_22, %c0_23, %c0_24] : memref<1x8x32xf32, #tpu.memory_space<vmem>>, vector<1x8x32xf32>
    %24 = vector.shape_cast %23 : vector<1x8x32xf32> to vector<8x32xf32>
    %25 = vector.shape_cast %22 : vector<8x32xf32> to vector<1x8x32xf32>
    tpu.vector_store %arg11[%c0_22, %c0_23, %c0_24], %25 {strides = array<i32>} : memref<1x8x32xf32, #tpu.memory_space<vmem>>, vector<1x8x32xf32>,
    return
  }
  func.func @transform_0(%arg0: i32, %arg1: i32) -> (i32, i32, i32) {
    %c0_i32 = arith.constant 0 : i32
    %c0_i32_0 = arith.constant 0 : i32
    return %arg0, %arg1, %c0_i32 : i32, i32, i32
  }
  func.func @transform_1(%arg0: i32, %arg1: i32) -> (i32, i32) {
    %c0_i32 = arith.constant 0 : i32
    %c0_i32_0 = arith.constant 0 : i32
    %c0_i32_1 = arith.constant 0 : i32
    return %c0_i32, %c0_i32_0 : i32, i32
  }
  func.func @transform_2(%arg0: i32, %arg1: i32) -> (i32, i32) {
    %c0_i32 = arith.constant 0 : i32
    %c0_i32_0 = arith.constant 0 : i32
    %c0_i32_1 = arith.constant 0 : i32
    return %c0_i32, %c0_i32_0 : i32, i32
  }
  func.func @transform_3(%arg0: i32, %arg1: i32) -> (i32, i32) {
    %c0_i32 = arith.constant 0 : i32
    %c0_i32_0 = arith.constant 0 : i32
    %c0_i32_1 = arith.constant 0 : i32
    return %c0_i32, %c0_i32_0 : i32, i32
  }
  func.func @transform_4(%arg0: i32, %arg1: i32) -> (i32, i32) {
    %c0_i32 = arith.constant 0 : i32
    %c0_i32_0 = arith.constant 0 : i32
    %c0_i32_1 = arith.constant 0 : i32
    return %c0_i32, %c0_i32_0 : i32, i32
  }
  func.func @transform_5(%arg0: i32, %arg1: i32) -> (i32, i32) {
    %c0_i32 = arith.constant 0 : i32
    %c0_i32_0 = arith.constant 0 : i32
    %c0_i32_1 = arith.constant 0 : i32
    return %c0_i32, %c0_i32_0 : i32, i32
  }
  func.func @transform_6(%arg0: i32, %arg1: i32) -> (i32, i32) {
    %c0_i32 = arith.constant 0 : i32
    %c0_i32_0 = arith.constant 0 : i32
    %c0_i32_1 = arith.constant 0 : i32
    return %c0_i32, %c0_i32_0 : i32, i32
  }
  func.func @transform_7(%arg0: i32, %arg1: i32) -> (i32, i32, i32) {
    %c0_i32 = arith.constant 0 : i32
    %c0_i32_0 = arith.constant 0 : i32
    return %arg0, %arg1, %c0_i32 : i32, i32, i32
  }
  func.func @transform_8(%arg0: i32, %arg1: i32) -> (i32, i32, i32) {
    %c0_i32 = arith.constant 0 : i32
    %c0_i32_0 = arith.constant 0 : i32
    return %arg0, %arg1, %c0_i32 : i32, i32, i32
  }
  func.func @transform_9(%arg0: i32, %arg1: i32) -> (i32, i32, i32) {
    %c0_i32 = arith.constant 0 : i32
    %c0_i32_0 = arith.constant 0 : i32
    return %arg0, %arg1, %c0_i32 : i32, i32, i32
  }
}

</mosaic_0001>

<llo_original>
// kernel: tpu_custom_call.1
$region0: #{tpu_custom_call.1}
  #allocation0 [shape = 'u32[]', space=smem, size = 0x4, offset = 0x4, fixed_abs, tag = 'smem constant byte address 0x4 - core index']
  #allocation1 [shape = 'u32[72,128]{1,0:T(1,128)}', space=vmem, size = 0x9000, scoped, tag = 'internal scratch']
  %s0 = inlined_call_operand.hbm [shape: f32[8,128], index: 0, kind: input, shape index: {}]
  %s1 = inlined_call_operand.hbm [shape: f32[8,128], index: 1, kind: output, shape index: {}]
  %s2 = sld [smem:[#allocation0]]
  $region18: #{tpu_custom_call.1} parent=0
    _
  %s4 = ssub.s32 1, %s2
  %s5 = scalar_select 0, %s4, %s2
  $region1: #{tpu_custom_call.1} parent=0
    #allocation2 [shape = 'u8[4096]{0}', space=vmem, size = 0x1000, scoped, tag = 'input window, operand 0, single buffered']
    #allocation3 [shape = 's32[1]{0}', space=sflag, size = 0x4, scoped, tag = 'scoped memory for tpu_custom_call.1']
    #allocation4 [shape = 's32[1]{0}', space=sflag, size = 0x4, scoped, tag = 'scoped memory for tpu_custom_call.1']
    #allocation5 [shape = 'u8[4096]{0}', space=vmem, size = 0x1000, scoped, tag = 'output window, operand 0, single buffered']
    %6 = vsyncpa [#allocation3], 0
    %7 = vsyncpa [#allocation4], 0
    // Predicated region
    $region2: #{tpu_custom_call.1} parent=1 // pred_check
      _
    $region3: #{tpu_custom_call.1} parent=1 // pred_check_branch
      %9 = sbr.rel (0) target = $region5
    $region4: #{tpu_custom_call.1} parent=1 // pred_region
      %11 = vsyncadd [#allocation3], 0
      %s13 = sshll.u32 %s0, 4
      %s14 = int_to_ptr.hbm [resolvable:$true] %s13
      %s15 = sshll.u32 [#allocation2], 4
      %s16 = int_to_ptr.vmem [resolvable:$true] %s15
      %18 = dma.hbm_to_vmem [thread:$0]  %s14, 128, %s16, [#allocation3]
    $region5: #{tpu_custom_call.1} parent=1 // pred_fallthru
      _
    // Predicated region
    $region6: #{tpu_custom_call.1} parent=1 // pred_check
      _
    $region7: #{tpu_custom_call.1} parent=1 // pred_check_branch
      %20 = sbr.rel (0) target = $region9
    $region8: #{tpu_custom_call.1} parent=1 // pred_region
      %22 = dma.done [#allocation3], 128
    $region9: #{tpu_custom_call.1} parent=1 // pred_fallthru
      _
    %v23 = vld [vmem:[#allocation2] sm:$0xff]
    %24 = vst [vmem:[#allocation5] sm:$0xff] %v23
    // Predicated region
    $region10: #{tpu_custom_call.1} parent=1 // pred_check
      _
    $region11: #{tpu_custom_call.1} parent=1 // pred_check_branch
      %26 = sbr.rel (0) target = $region13
    $region12: #{tpu_custom_call.1} parent=1 // pred_region
      %28 = vsyncadd [#allocation4], 0
      %s30 = sshll.u32 [#allocation5], 4
      %s31 = int_to_ptr.vmem [resolvable:$true] %s30
      %s32 = sshll.u32 %s1, 4
      %s33 = int_to_ptr.hbm [resolvable:$true] %s32
      %35 = dma.vmem_to_hbm [thread:$0]  %s31, 128, %s33, [#allocation4]
    $region13: #{tpu_custom_call.1} parent=1 // pred_fallthru
      _
    // Predicated region
    $region14: #{tpu_custom_call.1} parent=1 // pred_check
      _
    $region15: #{tpu_custom_call.1} parent=1 // pred_check_branch
      %37 = sbr.rel (0) target = $region17
    $region16: #{tpu_custom_call.1} parent=1 // pred_region
      %39 = dma.done [#allocation4], 128
    $region17: #{tpu_custom_call.1} parent=1 // pred_fallthru
      _
    %40 = vsyncpa [#allocation3], 1
    %41 = vsyncpa [#allocation4], 1

// kernel: tpu_custom_call.1
$region0: #{tpu_custom_call.1}
  #allocation0 [shape = 'u32[]', space=smem, size = 0x4, offset = 0x4, fixed_abs, tag = 'smem constant byte address 0x4 - core index']
  #allocation1 [shape = 'u32[72,128]{1,0:T(1,128)}', space=vmem, size = 0x9000, scoped, tag = 'internal scratch']
  %s0 = inlined_call_operand.hbm [shape: f32[2,8,32], index: 0, kind: input, shape index: {}]
  %s1 = inlined_call_operand.hbm [shape: f32[32,32], index: 1, kind: input, shape index: {}]
  %s2 = inlined_call_operand.hbm [shape: f32[32,32], index: 2, kind: input, shape index: {}]
  %s3 = inlined_call_operand.hbm [shape: f32[32,32], index: 3, kind: input, shape index: {}]
  %s4 = inlined_call_operand.vmem [shape: f32[1,32], index: 4, kind: input, shape index: {}]
  %s5 = inlined_call_operand.vmem [shape: f32[1,32], index: 5, kind: input, shape index: {}]
  %s6 = inlined_call_operand.vmem [shape: f32[1,32], index: 6, kind: input, shape index: {}]
  %s7 = inlined_call_operand.hbm [shape: f32[2,8,32], index: 7, kind: output, shape index: {0}]
  %s8 = inlined_call_operand.hbm [shape: f32[2,8,32], index: 8, kind: output, shape index: {1}]
  %s9 = inlined_call_operand.hbm [shape: f32[2,8,32], index: 9, kind: output, shape index: {2}]
  %10 = xla_tuple %s7, %s8, %s9
  %s11 = sld [smem:[#allocation0]]
  $region93: #{tpu_custom_call.1} parent=0
    _
  %s13 = ssub.s32 1, %s11
  %s14 = scalar_select 0, %s13, %s11
  $region1: #{tpu_custom_call.1} parent=0
    #allocation2 [shape = 'u8[8192]{0}', space=vmem, size = 0x2000, scoped, tag = 'input window, operand 0']
    #allocation3 [shape = 's32[2]{0}', space=sflag, size = 0x8, scoped, tag = 'scoped memory for tpu_custom_call.1']
    #allocation4 [shape = 's32[2]{0}', space=sflag, size = 0x8, scoped, tag = 'scoped memory for tpu_custom_call.1']
    #allocation5 [shape = 'u8[16384]{0}', space=vmem, size = 0x4000, scoped, tag = 'input window, operand 1, single buffered']
    #allocation6 [shape = 's32[1]{0}', space=sflag, size = 0x4, scoped, tag = 'scoped memory for tpu_custom_call.1']
    #allocation7 [shape = 'u8[16384]{0}', space=vmem, size = 0x4000, scoped, tag = 'input window, operand 2, single buffered']
    #allocation8 [shape = 'u8[16384]{0}', space=vmem, size = 0x4000, scoped, tag = 'input window, operand 3, single buffered']
    #allocation9 [shape = 's32[1]{0}', space=sflag, size = 0x4, scoped, tag = 'scoped memory for tpu_custom_call.1']
    #allocation10 [shape = 'u8[8192]{0}', space=vmem, size = 0x2000, scoped, tag = 'output window, operand 0']
    #allocation11 [shape = 'u8[8192]{0}', space=vmem, size = 0x2000, scoped, tag = 'output window, operand 1']
    #allocation12 [shape = 's32[2]{0}', space=sflag, size = 0x8, scoped, tag = 'scoped memory for tpu_custom_call.1']
    #allocation13 [shape = 'u8[8192]{0}', space=vmem, size = 0x2000, scoped, tag = 'output window, operand 2']
    %15 = vsyncpa [#allocation3], 0
    %s16 = scalar_lea.sflag [#allocation3], 1
    %17 = vsyncpa %s16, 0
    %18 = vsyncpa [#allocation6], 0
    %19 = vsyncpa [#allocation9], 0
    %20 = vsyncpa [#allocation4], 0
    %s21 = scalar_lea.sflag [#allocation4], 1
    %22 = vsyncpa %s21, 0
    %23 = vsyncpa [#allocation12], 0
    %s24 = scalar_lea.sflag [#allocation12], 1
    %25 = vsyncpa %s24, 0
    loop: start=0, step=1, limit=4
    $region2: #{tpu_custom_call.1} parent=1 // loop_pre_header
      _
    $region3: #{tpu_custom_call.1} parent=1 // loop_header
      %s27 = sphi 0, %s31
      %p28 = scmp.ge.s32.totalorder %s27, 4
      %s34 = sphi 0, %s46
      %s35 = sphi 0, %s42
      %s36 = sphi 0, %s34
      %s37 = sphi 0, %s35
      %s38 = sphi 0, %s36
      %s39 = sphi 0, %s37
      %s51 = sphi 0, %s53
      %s54 = sphi 0, %s51
      %s55 = sphi 0, %s54
      %s71 = sphi 0, %s55
      %s75 = sphi 0, %s75
      %s77 = sphi 0, %s75
      %s78 = sphi 0, %s77
      %s92 = sphi 0, %s78
      %s96 = sphi 0, %s96
      %s98 = sphi 0, %s96
      %s99 = sphi 0, %s98
      %s113 = sphi 0, %s99
      %s117 = sphi 0, %s117
      %s119 = sphi 0, %s117
      %s120 = sphi 0, %s119
      %s134 = sphi 0, %s120
      %s138 = sphi 0, %s138
      %s140 = sphi 0, %s138
      %s141 = sphi 0, %s140
      %s155 = sphi 0, %s141
      %s159 = sphi 0, %s159
      %s161 = sphi 0, %s159
      %s162 = sphi 0, %s161
      %s176 = sphi 0, %s162
      %s180 = sphi 0, %s180
      %s182 = sphi 0, %s180
      %s183 = sphi 0, %s182
      %s197 = sphi 0, %s183
      %s205 = sphi 0, %s207
      %s208 = sphi 0, %s205
      %s209 = sphi 0, %s208
      %s225 = sphi 0, %s209
      %s233 = sphi 0, %s235
      %s236 = sphi 0, %s233
      %s237 = sphi 0, %s236
      %s253 = sphi 0, %s237
      %s261 = sphi 0, %s263
      %s264 = sphi 0, %s261
      %s265 = sphi 0, %s264
      %s281 = sphi 0, %s265
    $region4: #{tpu_custom_call.1} parent=1 // loop_header_branch
      %30 = sbr.rel (%p28) target = $region8
    $region5: #{tpu_custom_call.1} parent=1 // loop_body
      %s32 = ssub.s32 %s27, 1
      %s33 = ssub.s32 %s27, 2
      %s40 = sadd.s32 1, %s35
      %p41 = scmp.ge.s32.totalorder %s40, 1
      %s42 = scalar_select %p41, 0, %s40
      %s43 = sadd.s32 1, %s34
      %s44 = scalar_select %p41, %s43, %s34
      %p45 = scmp.ge.s32.totalorder %s44, 2
      %s46 = scalar_select %p45, 0, %s44
      %s47 = ssub.s32 %s34, %s46
      %s48 = ssub.s32 %s35, %s42
      %s49 = sor.u32 %s47, %s48
      %p50 = scmp.eq.s32.totalorder %s49, 0
      %s52 = sadd.s32 %s51, 1
      %s53 = scalar_select %p50, %s51, %s52
      %p56 = pneg %p50
      %p57 = scmp.eq.s32.totalorder %s27, 1
      %p58 = por %p56, %p57
      %p59 = scmp.ne.s32.totalorder %s51, %s54
      %p60 = scmp.eq.s32.totalorder %s27, 0
      %p61 = por %p59, %p60
      %p62 = scmp.ne.s32.totalorder %s51, %s54
      %p63 = scmp.eq.s32.totalorder %s32, 1
      %p64 = por %p62, %p63
      %p65 = scmp.ne.s32.totalorder %s54, %s55
      %p66 = scmp.eq.s32.totalorder %s32, 0
      %p67 = por %p65, %p66
      %p68 = scmp.ne.s32.totalorder %s54, %s55
      %p69 = scmp.eq.s32.totalorder %s33, 1
      %p70 = por %p68, %p69
      %p72 = scmp.ne.s32.totalorder %s55, %s71
      %p73 = scmp.eq.s32.totalorder %s33, 0
      %p74 = por %p72, %p73
      %s76 = sadd.s32 %s75, 1
      %p79 = scmp.eq.s32.totalorder %s27, 1
      %p80 = scmp.ne.s32.totalorder %s75, %s77
      %p81 = scmp.eq.s32.totalorder %s27, 0
      %p82 = por %p80, %p81
      %p83 = scmp.ne.s32.totalorder %s75, %s77
      %p84 = scmp.eq.s32.totalorder %s32, 1
      %p85 = por %p83, %p84
      %p86 = scmp.ne.s32.totalorder %s77, %s78
      %p87 = scmp.eq.s32.totalorder %s32, 0
      %p88 = por %p86, %p87
      %p89 = scmp.ne.s32.totalorder %s77, %s78
      %p90 = scmp.eq.s32.totalorder %s33, 1
      %p91 = por %p89, %p90
      %p93 = scmp.ne.s32.totalorder %s78, %s92
      %p94 = scmp.eq.s32.totalorder %s33, 0
      %p95 = por %p93, %p94
      %s97 = sadd.s32 %s96, 1
      %p100 = scmp.eq.s32.totalorder %s27, 1
      %p101 = scmp.ne.s32.totalorder %s96, %s98
      %p102 = scmp.eq.s32.totalorder %s27, 0
      %p103 = por %p101, %p102
      %p104 = scmp.ne.s32.totalorder %s96, %s98
      %p105 = scmp.eq.s32.totalorder %s32, 1
      %p106 = por %p104, %p105
      %p107 = scmp.ne.s32.totalorder %s98, %s99
      %p108 = scmp.eq.s32.totalorder %s32, 0
      %p109 = por %p107, %p108
      %p110 = scmp.ne.s32.totalorder %s98, %s99
      %p111 = scmp.eq.s32.totalorder %s33, 1
      %p112 = por %p110, %p111
      %p114 = scmp.ne.s32.totalorder %s99, %s113
      %p115 = scmp.eq.s32.totalorder %s33, 0
      %p116 = por %p114, %p115
      %s118 = sadd.s32 %s117, 1
      %p121 = scmp.eq.s32.totalorder %s27, 1
      %p122 = scmp.ne.s32.totalorder %s117, %s119
      %p123 = scmp.eq.s32.totalorder %s27, 0
      %p124 = por %p122, %p123
      %p125 = scmp.ne.s32.totalorder %s117, %s119
      %p126 = scmp.eq.s32.totalorder %s32, 1
      %p127 = por %p125, %p126
      %p128 = scmp.ne.s32.totalorder %s119, %s120
      %p129 = scmp.eq.s32.totalorder %s32, 0
      %p130 = por %p128, %p129
      %p131 = scmp.ne.s32.totalorder %s119, %s120
      %p132 = scmp.eq.s32.totalorder %s33, 1
      %p133 = por %p131, %p132
      %p135 = scmp.ne.s32.totalorder %s120, %s134
      %p136 = scmp.eq.s32.totalorder %s33, 0
      %p137 = por %p135, %p136
      %s139 = sadd.s32 %s138, 1
      %p142 = scmp.eq.s32.totalorder %s27, 1
      %p143 = scmp.ne.s32.totalorder %s138, %s140
      %p144 = scmp.eq.s32.totalorder %s27, 0
      %p145 = por %p143, %p144
      %p146 = scmp.ne.s32.totalorder %s138, %s140
      %p147 = scmp.eq.s32.totalorder %s32, 1
      %p148 = por %p146, %p147
      %p149 = scmp.ne.s32.totalorder %s140, %s141
      %p150 = scmp.eq.s32.totalorder %s32, 0
      %p151 = por %p149, %p150
      %p152 = scmp.ne.s32.totalorder %s140, %s141
      %p153 = scmp.eq.s32.totalorder %s33, 1
      %p154 = por %p152, %p153
      %p156 = scmp.ne.s32.totalorder %s141, %s155
      %p157 = scmp.eq.s32.totalorder %s33, 0
      %p158 = por %p156, %p157
      %s160 = sadd.s32 %s159, 1
      %p163 = scmp.eq.s32.totalorder %s27, 1
      %p164 = scmp.ne.s32.totalorder %s159, %s161
      %p165 = scmp.eq.s32.totalorder %s27, 0
      %p166 = por %p164, %p165
      %p167 = scmp.ne.s32.totalorder %s159, %s161
      %p168 = scmp.eq.s32.totalorder %s32, 1
      %p169 = por %p167, %p168
      %p170 = scmp.ne.s32.totalorder %s161, %s162
      %p171 = scmp.eq.s32.totalorder %s32, 0
      %p172 = por %p170, %p171
      %p173 = scmp.ne.s32.totalorder %s161, %s162
      %p174 = scmp.eq.s32.totalorder %s33, 1
      %p175 = por %p173, %p174
      %p177 = scmp.ne.s32.totalorder %s162, %s176
      %p178 = scmp.eq.s32.totalorder %s33, 0
      %p179 = por %p177, %p178
      %s181 = sadd.s32 %s180, 1
      %p184 = scmp.eq.s32.totalorder %s27, 1
      %p185 = scmp.ne.s32.totalorder %s180, %s182
      %p186 = scmp.eq.s32.totalorder %s27, 0
      %p187 = por %p185, %p186
      %p188 = scmp.ne.s32.totalorder %s180, %s182
      %p189 = scmp.eq.s32.totalorder %s32, 1
      %p190 = por %p188, %p189
      %p191 = scmp.ne.s32.totalorder %s182, %s183
      %p192 = scmp.eq.s32.totalorder %s32, 0
      %p193 = por %p191, %p192
      %p194 = scmp.ne.s32.totalorder %s182, %s183
      %p195 = scmp.eq.s32.totalorder %s33, 1
      %p196 = por %p194, %p195
      %p198 = scmp.ne.s32.totalorder %s183, %s197
      %p199 = scmp.eq.s32.totalorder %s33, 0
      %p200 = por %p198, %p199
      %s201 = ssub.s32 %s34, %s46
      %s202 = ssub.s32 %s35, %s42
      %s203 = sor.u32 %s201, %s202
      %p204 = scmp.eq.s32.totalorder %s203, 0
      %s206 = sadd.s32 %s205, 1
      %s207 = scalar_select %p204, %s205, %s206
      %p210 = pneg %p204
      %p211 = scmp.eq.s32.totalorder %s27, 1
      %p212 = por %p210, %p211
      %p213 = scmp.ne.s32.totalorder %s205, %s208
      %p214 = scmp.eq.s32.totalorder %s27, 0
      %p215 = por %p213, %p214
      %p216 = scmp.ne.s32.totalorder %s205, %s208
      %p217 = scmp.eq.s32.totalorder %s32, 1
      %p218 = por %p216, %p217
      %p219 = scmp.ne.s32.totalorder %s208, %s209
      %p220 = scmp.eq.s32.totalorder %s32, 0
      %p221 = por %p219, %p220
      %p222 = scmp.ne.s32.totalorder %s208, %s209
      %p223 = scmp.eq.s32.totalorder %s33, 1
      %p224 = por %p222, %p223
      %p226 = scmp.ne.s32.totalorder %s209, %s225
      %p227 = scmp.eq.s32.totalorder %s33, 0
      %p228 = por %p226, %p227
      %s229 = ssub.s32 %s34, %s46
      %s230 = ssub.s32 %s35, %s42
      %s231 = sor.u32 %s229, %s230
      %p232 = scmp.eq.s32.totalorder %s231, 0
      %s234 = sadd.s32 %s233, 1
      %s235 = scalar_select %p232, %s233, %s234
      %p238 = pneg %p232
      %p239 = scmp.eq.s32.totalorder %s27, 1
      %p240 = por %p238, %p239
      %p241 = scmp.ne.s32.totalorder %s233, %s236
      %p242 = scmp.eq.s32.totalorder %s27, 0
      %p243 = por %p241, %p242
      %p244 = scmp.ne.s32.totalorder %s233, %s236
      %p245 = scmp.eq.s32.totalorder %s32, 1
      %p246 = por %p244, %p245
      %p247 = scmp.ne.s32.totalorder %s236, %s237
      %p248 = scmp.eq.s32.totalorder %s32, 0
      %p249 = por %p247, %p248
      %p250 = scmp.ne.s32.totalorder %s236, %s237
      %p251 = scmp.eq.s32.totalorder %s33, 1
      %p252 = por %p250, %p251
      %p254 = scmp.ne.s32.totalorder %s237, %s253
      %p255 = scmp.eq.s32.totalorder %s33, 0
      %p256 = por %p254, %p255
      %s257 = ssub.s32 %s34, %s46
      %s258 = ssub.s32 %s35, %s42
      %s259 = sor.u32 %s257, %s258
      %p260 = scmp.eq.s32.totalorder %s259, 0
      %s262 = sadd.s32 %s261, 1
      %s263 = scalar_select %p260, %s261, %s262
      %p266 = pneg %p260
      %p267 = scmp.eq.s32.totalorder %s27, 1
      %p268 = por %p266, %p267
      %p269 = scmp.ne.s32.totalorder %s261, %s264
      %p270 = scmp.eq.s32.totalorder %s27, 0
      %p271 = por %p269, %p270
      %p272 = scmp.ne.s32.totalorder %s261, %s264
      %p273 = scmp.eq.s32.totalorder %s32, 1
      %p274 = por %p272, %p273
      %p275 = scmp.ne.s32.totalorder %s264, %s265
      %p276 = scmp.eq.s32.totalorder %s32, 0
      %p277 = por %p275, %p276
      %p278 = scmp.ne.s32.totalorder %s264, %s265
      %p279 = scmp.eq.s32.totalorder %s33, 1
      %p280 = por %p278, %p279
      %p282 = scmp.ne.s32.totalorder %s265, %s281
      %p283 = scmp.eq.s32.totalorder %s33, 0
      %p284 = por %p282, %p283
      %p285 = scmp.le.s32.totalorder 1, %s27
      %p286 = scmp.lt.s32.totalorder %s27, 3
      %p287 = pnand %p285, %p286
      %p288 = pneg %p287
      // Predicated region
      $region9: #{tpu_custom_call.1} parent=5 // pred_check
        _
      $region10: #{tpu_custom_call.1} parent=5 // pred_check_branch
        %290 = sbr.rel (%p287) target = $region12
      $region11: #{tpu_custom_call.1} parent=5 // pred_region
        %s291 = ssub.s32 %s27, 1
        // Predicated region
        $region13: #{tpu_custom_call.1} parent=11 // pred_check
          %p292 = pneg %p88
        $region14: #{tpu_custom_call.1} parent=11 // pred_check_branch
          %294 = sbr.rel (%p292) target = $region16
        $region15: #{tpu_custom_call.1} parent=11 // pred_region
          %296 = vsyncadd [#allocation6], 0
          %s297 = sshll.u32 %s1, 4
          %s298 = int_to_ptr.hbm [resolvable:$true] %s297
          %s299 = sshll.u32 [#allocation5], 4
          %s300 = int_to_ptr.vmem [resolvable:$true] %s299
          %305 = dma.hbm_to_vmem [thread:$0]  %s298, 512, %s300, [#allocation6], 128, 128, 8
        $region16: #{tpu_custom_call.1} parent=11 // pred_fallthru
          _
        // Predicated region
        $region17: #{tpu_custom_call.1} parent=11 // pred_check
          %p306 = pneg %p109
        $region18: #{tpu_custom_call.1} parent=11 // pred_check_branch
          %308 = sbr.rel (%p306) target = $region20
        $region19: #{tpu_custom_call.1} parent=11 // pred_region
          %310 = vsyncadd [#allocation6], 0
          %s311 = sshll.u32 %s2, 4
          %s312 = int_to_ptr.hbm [resolvable:$true] %s311
          %s313 = sshll.u32 [#allocation7], 4
          %s314 = int_to_ptr.vmem [resolvable:$true] %s313
          %319 = dma.hbm_to_vmem [thread:$0]  %s312, 512, %s314, [#allocation6], 128, 128, 8
        $region20: #{tpu_custom_call.1} parent=11 // pred_fallthru
          _
        // Predicated region
        $region21: #{tpu_custom_call.1} parent=11 // pred_check
          %p320 = pneg %p130
        $region22: #{tpu_custom_call.1} parent=11 // pred_check_branch
          %322 = sbr.rel (%p320) target = $region24
        $region23: #{tpu_custom_call.1} parent=11 // pred_region
          %324 = vsyncadd [#allocation9], 0
          %s325 = sshll.u32 %s3, 4
          %s326 = int_to_ptr.hbm [resolvable:$true] %s325
          %s327 = sshll.u32 [#allocation8], 4
          %s328 = int_to_ptr.vmem [resolvable:$true] %s327
          %333 = dma.hbm_to_vmem [thread:$0]  %s326, 512, %s328, [#allocation9], 128, 128, 8
        $region24: #{tpu_custom_call.1} parent=11 // pred_fallthru
          _
        // Predicated region
        $region25: #{tpu_custom_call.1} parent=11 // pred_check
          %p334 = pneg %p151
        $region26: #{tpu_custom_call.1} parent=11 // pred_check_branch
          %336 = sbr.rel (%p334) target = $region28
        $region27: #{tpu_custom_call.1} parent=11 // pred_region
          _
        $region28: #{tpu_custom_call.1} parent=11 // pred_fallthru
          _
        // Predicated region
        $region29: #{tpu_custom_call.1} parent=11 // pred_check
          %p337 = pneg %p172
        $region30: #{tpu_custom_call.1} parent=11 // pred_check_branch
          %339 = sbr.rel (%p337) target = $region32
        $region31: #{tpu_custom_call.1} parent=11 // pred_region
          _
        $region32: #{tpu_custom_call.1} parent=11 // pred_fallthru
          _
        // Predicated region
        $region33: #{tpu_custom_call.1} parent=11 // pred_check
          %p340 = pneg %p193
        $region34: #{tpu_custom_call.1} parent=11 // pred_check_branch
          %342 = sbr.rel (%p340) target = $region36
        $region35: #{tpu_custom_call.1} parent=11 // pred_region
          _
        $region36: #{tpu_custom_call.1} parent=11 // pred_fallthru
          _
      $region12: #{tpu_custom_call.1} parent=5 // pred_fallthru
        _
      %p343 = scmp.lt.s32.totalorder %s27, 2
      // Predicated region
      $region37: #{tpu_custom_call.1} parent=5 // pred_check
        %p344 = pneg %p343
      $region38: #{tpu_custom_call.1} parent=5 // pred_check_branch
        %346 = sbr.rel (%p344) target = $region40
      $region39: #{tpu_custom_call.1} parent=5 // pred_region
        // Predicated region
        $region41: #{tpu_custom_call.1} parent=39 // pred_check
          %p347 = pneg %p61
        $region42: #{tpu_custom_call.1} parent=39 // pred_check_branch
          %349 = sbr.rel (%p347) target = $region44
        $region43: #{tpu_custom_call.1} parent=39 // pred_region
          %s350 = sand.u32 %s51, 1
          %s351 = scalar_lea.sflag [#allocation3], %s350
          %s352 = sand.u32 %s51, 1
          %s353 = smul.addr %s352, 8
          %s354 = scalar_lea.vmem [#allocation2], %s353
          %356 = vsyncadd %s351, 0
          %s357 = sadd.s32 %s35, %s34
          %s358 = smul.addr %s357, 8
          %s359 = scalar_lea.hbm %s0, %s358
          %s361 = sshll.u32 %s359, 4
          %s362 = int_to_ptr.hbm [resolvable:$true] %s361
          %s363 = sshll.u32 %s354, 4
          %s364 = int_to_ptr.vmem [resolvable:$true] %s363
          %366 = dma.hbm_to_vmem [thread:$0]  %s362, 128, %s364, %s351
        $region44: #{tpu_custom_call.1} parent=39 // pred_fallthru
          _
      $region40: #{tpu_custom_call.1} parent=5 // pred_fallthru
        _
      %p367 = scmp.le.s32.totalorder 1, %s27
      %p368 = scmp.lt.s32.totalorder %s27, 3
      %p369 = pnand %p367, %p368
      %p370 = pneg %p369
      // Predicated region
      $region45: #{tpu_custom_call.1} parent=5 // pred_check
        _
      $region46: #{tpu_custom_call.1} parent=5 // pred_check_branch
        %372 = sbr.rel (%p369) target = $region48
      $region47: #{tpu_custom_call.1} parent=5 // pred_region
        %s373 = ssub.s32 %s27, 1
        %s374 = sand.u32 %s54, 1
        %s375 = scalar_lea.sflag [#allocation3], %s374
        %s376 = sand.u32 %s54, 1
        %s377 = smul.addr %s376, 8
        %s378 = scalar_lea.vmem [#allocation2], %s377
        // Predicated region
        $region49: #{tpu_custom_call.1} parent=47 // pred_check
          %p379 = pneg %p67
        $region50: #{tpu_custom_call.1} parent=47 // pred_check_branch
          %381 = sbr.rel (%p379) target = $region52
        $region51: #{tpu_custom_call.1} parent=47 // pred_region
          %383 = dma.done %s375, 128
        $region52: #{tpu_custom_call.1} parent=47 // pred_fallthru
          _
        // Predicated region
        $region53: #{tpu_custom_call.1} parent=47 // pred_check
          %p384 = pneg %p88
        $region54: #{tpu_custom_call.1} parent=47 // pred_check_branch
          %386 = sbr.rel (%p384) target = $region56
        $region55: #{tpu_custom_call.1} parent=47 // pred_region
          %388 = dma.done [#allocation6], 512
        $region56: #{tpu_custom_call.1} parent=47 // pred_fallthru
          _
        // Predicated region
        $region57: #{tpu_custom_call.1} parent=47 // pred_check
          %p389 = pneg %p109
        $region58: #{tpu_custom_call.1} parent=47 // pred_check_branch
          %391 = sbr.rel (%p389) target = $region60
        $region59: #{tpu_custom_call.1} parent=47 // pred_region
          %393 = dma.done [#allocation6], 512
        $region60: #{tpu_custom_call.1} parent=47 // pred_fallthru
          _
        // Predicated region
        $region61: #{tpu_custom_call.1} parent=47 // pred_check
          %p394 = pneg %p130
        $region62: #{tpu_custom_call.1} parent=47 // pred_check_branch
          %396 = sbr.rel (%p394) target = $region64
        $region63: #{tpu_custom_call.1} parent=47 // pred_region
          %398 = dma.done [#allocation9], 512
        $region64: #{tpu_custom_call.1} parent=47 // pred_fallthru
          _
        %s399 = sand.u32 %s54, 1
        %s400 = scalar_lea.sflag [#allocation3], %s399
        %s401 = sand.u32 %s54, 1
        %s402 = smul.addr %s401, 8
        %s403 = scalar_lea.vmem [#allocation2], %s402
        %p404 = pneg %p67
        %p405 = pneg %p64
        %p406 = pneg %p88
        %p407 = pneg %p85
        %p408 = pneg %p109
        %p409 = pneg %p106
        %p410 = pneg %p130
        %p411 = pneg %p127
        %p412 = pneg %p151
        %p413 = pneg %p148
        %p414 = pneg %p172
        %p415 = pneg %p169
        %p416 = pneg %p193
        %p417 = pneg %p190
        %p418 = pneg %p221
        %p419 = pneg %p218
        %s420 = sand.u32 %s208, 1
        %s421 = scalar_lea.sflag [#allocation4], %s420
        %s422 = sand.u32 %s208, 1
        %s423 = smul.addr %s422, 8
        %s424 = scalar_lea.vmem [#allocation10], %s423
        %p425 = pneg %p249
        %p426 = pneg %p246
        %s427 = sand.u32 %s32, 1
        %s428 = scalar_lea.sflag [#allocation12], %s427
        %s429 = sand.u32 %s236, 1
        %s430 = smul.addr %s429, 8
        %s431 = scalar_lea.vmem [#allocation11], %s430
        %p432 = pneg %p277
        %p433 = pneg %p274
        %s434 = sand.u32 %s32, 1
        %s435 = scalar_lea.sflag [#allocation12], %s434
        %s436 = sand.u32 %s264, 1
        %s437 = smul.addr %s436, 8
        %s438 = scalar_lea.vmem [#allocation13], %s437
        %v439 = vld [vmem:[%s378] sm:$0xff]
        %v440 = vld [vmem:[#allocation5] sm:$0xff]
        %v441 = vld [vmem:[#allocation5 + $0x8] sm:$0xff]
        %v442 = vld [vmem:[#allocation5 + $0x10] sm:$0xff]
        %v443 = vld [vmem:[#allocation5 + $0x18] sm:$0xff]
        %v444 = vld [vmem:[%s4] sm:$0x1]
        %v446 = vperm.slane %v444, 0
        %vm448 = vcmask 261120
        %v450 = vsel %vm448, %v439, 0
        %452 = vmatpush.msra.mxu0 0.0
        %453 = vmatpush.msra.mxu0 0.0
        %454 = vmatpush.msra.mxu0 0.0
        %455 = vmatpush.msra.mxu0 0.0
        %456 = vmatpush.msra.mxu0 0.0
        %457 = vmatpush.msra.mxu0 0.0
        %458 = vmatpush.msra.mxu0 0.0
        %459 = vmatpush.msra.mxu0 0.0
        %460 = vmatpush.msra.mxu0 0.0
        %461 = vmatpush.msra.mxu0 0.0
        %462 = vmatpush.msra.mxu0 0.0
        %463 = vmatpush.msra.mxu0 0.0
        %464 = vmatpush.msra.mxu0 %v443
        %465 = vmatpush.msra.mxu0 %v442
        %466 = vmatpush.msra.mxu0 %v441
        %467 = vmatpush.msra.mxu0 %v440
        %468 = vmatmul.f32.gmra.mxu0 %v450
        %v469 = vpop.f32.mrf.mxu0
        %v470 = vadd.f32 %v446, %v469
        %471 = vdwg.mxu0
        %472 = vst.msk [vmem:[%s424] sm:$0xff] %vm448, %v470
        %v473 = vld [vmem:[#allocation7] sm:$0xff]
        %v474 = vld [vmem:[#allocation7 + $0x8] sm:$0xff]
        %v475 = vld [vmem:[#allocation7 + $0x10] sm:$0xff]
        %v476 = vld [vmem:[#allocation7 + $0x18] sm:$0xff]
        %v477 = vld [vmem:[%s5] sm:$0x1]
        %v479 = vperm.slane %v477, 0
        %481 = vmatpush.msra.mxu0 0.0
        %482 = vmatpush.msra.mxu0 0.0
        %483 = vmatpush.msra.mxu0 0.0
        %484 = vmatpush.msra.mxu0 0.0
        %485 = vmatpush.msra.mxu0 0.0
        %486 = vmatpush.msra.mxu0 0.0
        %487 = vmatpush.msra.mxu0 0.0
        %488 = vmatpush.msra.mxu0 0.0
        %489 = vmatpush.msra.mxu0 0.0
        %490 = vmatpush.msra.mxu0 0.0
        %491 = vmatpush.msra.mxu0 0.0
        %492 = vmatpush.msra.mxu0 0.0
        %493 = vmatpush.msra.mxu0 %v476
        %494 = vmatpush.msra.mxu0 %v475
        %495 = vmatpush.msra.mxu0 %v474
        %496 = vmatpush.msra.mxu0 %v473
        %497 = vmatmul.f32.gmra.mxu0 %v450
        %v498 = vpop.f32.mrf.mxu0
        %v499 = vadd.f32 %v479, %v498
        %500 = vdwg.mxu0
        %501 = vst.msk [vmem:[%s431] sm:$0xff] %vm448, %v499
        %v502 = vld [vmem:[#allocation8] sm:$0xff]
        %v503 = vld [vmem:[#allocation8 + $0x8] sm:$0xff]
        %v504 = vld [vmem:[#allocation8 + $0x10] sm:$0xff]
        %v505 = vld [vmem:[#allocation8 + $0x18] sm:$0xff]
        %v506 = vld [vmem:[%s6] sm:$0x1]
        %v508 = vperm.slane %v506, 0
        %510 = vmatpush.msra.mxu0 0.0
        %511 = vmatpush.msra.mxu0 0.0
        %512 = vmatpush.msra.mxu0 0.0
        %513 = vmatpush.msra.mxu0 0.0
        %514 = vmatpush.msra.mxu0 0.0
        %515 = vmatpush.msra.mxu0 0.0
        %516 = vmatpush.msra.mxu0 0.0
        %517 = vmatpush.msra.mxu0 0.0
        %518 = vmatpush.msra.mxu0 0.0
        %519 = vmatpush.msra.mxu0 0.0
        %520 = vmatpush.msra.mxu0 0.0
        %521 = vmatpush.msra.mxu0 0.0
        %522 = vmatpush.msra.mxu0 %v505
        %523 = vmatpush.msra.mxu0 %v504
        %524 = vmatpush.msra.mxu0 %v503
        %525 = vmatpush.msra.mxu0 %v502
        %526 = vmatmul.f32.gmra.mxu0 %v450
        %v527 = vpop.f32.mrf.mxu0
        %v528 = vadd.f32 %v508, %v527
        %529 = vdwg.mxu0
        %530 = vst.msk [vmem:[%s438] sm:$0xff] %vm448, %v528
        %s531 = sand.u32 %s208, 1
        %s532 = scalar_lea.sflag [#allocation4], %s531
        %s533 = sand.u32 %s208, 1
        %s534 = smul.addr %s533, 8
        %s535 = scalar_lea.vmem [#allocation10], %s534
        %s536 = sand.u32 %s32, 1
        %s537 = scalar_lea.sflag [#allocation12], %s536
        %s538 = sand.u32 %s236, 1
        %s539 = smul.addr %s538, 8
        %s540 = scalar_lea.vmem [#allocation11], %s539
        %s541 = sand.u32 %s32, 1
        %s542 = scalar_lea.sflag [#allocation12], %s541
        %s543 = sand.u32 %s264, 1
        %s544 = smul.addr %s543, 8
        %s545 = scalar_lea.vmem [#allocation13], %s544
        // Predicated region
        $region65: #{tpu_custom_call.1} parent=47 // pred_check
          %p546 = pneg %p218
        $region66: #{tpu_custom_call.1} parent=47 // pred_check_branch
          %548 = sbr.rel (%p546) target = $region68
        $region67: #{tpu_custom_call.1} parent=47 // pred_region
          %550 = vsyncadd %s532, 0
          %s551 = sadd.s32 %s37, %s36
          %s552 = smul.addr %s551, 8
          %s553 = scalar_lea.hbm %s7, %s552
          %s555 = sshll.u32 %s535, 4
          %s556 = int_to_ptr.vmem [resolvable:$true] %s555
          %s557 = sshll.u32 %s553, 4
          %s558 = int_to_ptr.hbm [resolvable:$true] %s557
          %560 = dma.vmem_to_hbm [thread:$0]  %s556, 128, %s558, %s532
        $region68: #{tpu_custom_call.1} parent=47 // pred_fallthru
          _
        // Predicated region
        $region69: #{tpu_custom_call.1} parent=47 // pred_check
          %p561 = pneg %p246
        $region70: #{tpu_custom_call.1} parent=47 // pred_check_branch
          %563 = sbr.rel (%p561) target = $region72
        $region71: #{tpu_custom_call.1} parent=47 // pred_region
          %565 = vsyncadd %s537, 0
          %s566 = sadd.s32 %s37, %s36
          %s567 = smul.addr %s566, 8
          %s568 = scalar_lea.hbm %s8, %s567
          %s570 = sshll.u32 %s540, 4
          %s571 = int_to_ptr.vmem [resolvable:$true] %s570
          %s572 = sshll.u32 %s568, 4
          %s573 = int_to_ptr.hbm [resolvable:$true] %s572
          %575 = dma.vmem_to_hbm [thread:$0]  %s571, 128, %s573, %s537
        $region72: #{tpu_custom_call.1} parent=47 // pred_fallthru
          _
        // Predicated region
        $region73: #{tpu_custom_call.1} parent=47 // pred_check
          %p576 = pneg %p274
        $region74: #{tpu_custom_call.1} parent=47 // pred_check_branch
          %578 = sbr.rel (%p576) target = $region76
        $region75: #{tpu_custom_call.1} parent=47 // pred_region
          %580 = vsyncadd %s542, 0
          %s581 = sadd.s32 %s37, %s36
          %s582 = smul.addr %s581, 8
          %s583 = scalar_lea.hbm %s9, %s582
          %s585 = sshll.u32 %s545, 4
          %s586 = int_to_ptr.vmem [resolvable:$true] %s585
          %s587 = sshll.u32 %s583, 4
          %s588 = int_to_ptr.hbm [resolvable:$true] %s587
          %590 = dma.vmem_to_hbm [thread:$0]  %s586, 128, %s588, %s542
        $region76: #{tpu_custom_call.1} parent=47 // pred_fallthru
          _
      $region48: #{tpu_custom_call.1} parent=5 // pred_fallthru
        _
      %p591 = scmp.le.s32.totalorder 2, %s27
      // Predicated region
      $region77: #{tpu_custom_call.1} parent=5 // pred_check
        %p592 = pneg %p591
      $region78: #{tpu_custom_call.1} parent=5 // pred_check_branch
        %594 = sbr.rel (%p592) target = $region80
      $region79: #{tpu_custom_call.1} parent=5 // pred_region
        %s595 = ssub.s32 %s27, 2
        // Predicated region
        $region81: #{tpu_custom_call.1} parent=79 // pred_check
          %p596 = pneg %p224
        $region82: #{tpu_custom_call.1} parent=79 // pred_check_branch
          %598 = sbr.rel (%p596) target = $region84
        $region83: #{tpu_custom_call.1} parent=79 // pred_region
          %s599 = sand.u32 %s209, 1
          %s600 = scalar_lea.sflag [#allocation4], %s599
          %s601 = sand.u32 %s209, 1
          %s602 = smul.addr %s601, 8
          %s603 = scalar_lea.vmem [#allocation10], %s602
          %605 = dma.done %s600, 128
        $region84: #{tpu_custom_call.1} parent=79 // pred_fallthru
          _
        // Predicated region
        $region85: #{tpu_custom_call.1} parent=79 // pred_check
          %p606 = pneg %p252
        $region86: #{tpu_custom_call.1} parent=79 // pred_check_branch
          %608 = sbr.rel (%p606) target = $region88
        $region87: #{tpu_custom_call.1} parent=79 // pred_region
          %s609 = sand.u32 %s33, 1
          %s610 = scalar_lea.sflag [#allocation12], %s609
          %s611 = sand.u32 %s237, 1
          %s612 = smul.addr %s611, 8
          %s613 = scalar_lea.vmem [#allocation11], %s612
          %615 = dma.done %s610, 128
        $region88: #{tpu_custom_call.1} parent=79 // pred_fallthru
          _
        // Predicated region
        $region89: #{tpu_custom_call.1} parent=79 // pred_check
          %p616 = pneg %p280
        $region90: #{tpu_custom_call.1} parent=79 // pred_check_branch
          %618 = sbr.rel (%p616) target = $region92
        $region91: #{tpu_custom_call.1} parent=79 // pred_region
          %s619 = sand.u32 %s33, 1
          %s620 = scalar_lea.sflag [#allocation12], %s619
          %s621 = sand.u32 %s265, 1
          %s622 = smul.addr %s621, 8
          %s623 = scalar_lea.vmem [#allocation13], %s622
          %625 = dma.done %s620, 128
        $region92: #{tpu_custom_call.1} parent=79 // pred_fallthru
          _
      $region80: #{tpu_custom_call.1} parent=5 // pred_fallthru
        _
    $region6: #{tpu_custom_call.1} parent=1 // loop_footer
      %s31 = sadd.s32 1, %s27
    $region7: #{tpu_custom_call.1} parent=1 // loop_footer_branch
      %26 = sbr.rel target = $region3
    $region8: #{tpu_custom_call.1} parent=1 // loop_exit
      _
    %626 = vsyncpa [#allocation3], 1
    %s627 = scalar_lea.sflag [#allocation3], 1
    %628 = vsyncpa %s627, 1
    %629 = vsyncpa [#allocation6], 1
    %630 = vsyncpa [#allocation9], 1
    %631 = vsyncpa [#allocation4], 1
    %s632 = scalar_lea.sflag [#allocation4], 1
    %633 = vsyncpa %s632, 1
    %634 = vsyncpa [#allocation12], 1
    %s635 = scalar_lea.sflag [#allocation12], 1
    %636 = vsyncpa %s635, 1

</llo_original>
